<compile_context>
chip_gen: v7x
topology: tpu7x:2x2x1
jax: 0.10.0
libtpu: 0.0.40
codegen_flags: <defaults>
</compile_context>

<pallas_src>
import jax
import jax.numpy as jnp
from jax.experimental import pallas as pl
from jax.experimental.pallas import tpu as pltpu


def predictor_kernel(x_ref, w_in_ref, b_h_ref, w_hid_ref, w_out_ref,
                     b_out_ref, o_ref):
    x = x_ref[...]                       # (TB, P) f32
    b_h = b_h_ref[...]                   # (5, H), read once

    # layer 0: (TB,P) @ (P,H) + b0, ReLU
    h = jnp.dot(x, w_in_ref[...], preferred_element_type=jnp.float32)
    h = jnp.maximum(h + b_h[0:1, :], 0.0)

    # layers 1..4: (TB,H) @ (H,H) + b, ReLU  (statically unrolled)
    for i in range(4):
        h = jnp.dot(h, w_hid_ref[i], preferred_element_type=jnp.float32)
        h = jnp.maximum(h + b_h[i + 1:i + 2, :], 0.0)

    # final layer: (TB,H) @ (H,C) + b5, no ReLU
    out = jnp.dot(h, w_out_ref[...], preferred_element_type=jnp.float32)
    o_ref[...] = (out + b_out_ref[...]).astype(o_ref.dtype)


def _round_up(n, m):
    return ((n + m - 1) // m) * m


def pack_params(params):
    """params: list of 6 (W, b) pairs with W stored (in, out).
    Returns (w_in, b_h, w_hid, w_out, b_out) packed for the kernel."""
    w_in = params[0][0]                                        # (P, H)
    w_hid = jnp.stack([params[i][0] for i in range(1, 5)])     # (4, H, H)
    w_out = params[5][0]                                       # (H, C)
    b_h = jnp.stack([params[i][1] for i in range(5)])          # (5, H)
    b_out = params[5][1].reshape(1, -1)                        # (1, C)
    return w_in, b_h, w_hid, w_out, b_out


def predictor_forward(x, params, *, block_b=256):
    """x: (B, P) float32; params: list of 6 (W, b) pairs with W (in, out)."""
    B, P = x.shape
    H = params[0][0].shape[1]
    C = params[-1][0].shape[1]

    w_in, b_h, w_hid, w_out, b_out = pack_params(params)

    # Batch tile: multiple of 8 (sublane), as large as reasonable.
    tb = min(block_b, _round_up(B, 8))
    b_pad = _round_up(B, tb)
    if b_pad != B:
        x = jnp.pad(x, ((0, b_pad - B), (0, 0)))
    grid = (b_pad // tb,)

    out = pl.pallas_call(
        predictor_kernel,
        out_shape=jax.ShapeDtypeStruct((b_pad, C), jnp.float32),
        grid=grid,
        in_specs=[
            pl.BlockSpec((tb, P), lambda i: (i, 0)),        # x: tiled over batch
            pl.BlockSpec((P, H), lambda i: (0, 0)),         # w_in: VMEM-resident
            pl.BlockSpec((5, H), lambda i: (0, 0)),         # hidden biases
            pl.BlockSpec((4, H, H), lambda i: (0, 0, 0)),   # stacked hidden weights
            pl.BlockSpec((H, C), lambda i: (0, 0)),         # w_out
            pl.BlockSpec((1, C), lambda i: (0, 0)),         # b_out
        ],
        out_specs=pl.BlockSpec((tb, C), lambda i: (i, 0)),
        compiler_params=pltpu.CompilerParams(
            dimension_semantics=("parallel",)),
    )(x, w_in, b_h, w_hid, w_out, b_out)

    return out[:B]


def init_params(key, params_length, code_length, hidden_length):
    """Deterministic init matching PyTorch Linear default (uniform +-1/sqrt(fan_in)),
    but with weights stored as (in, out)."""
    dims = [(params_length, hidden_length)] + \
           [(hidden_length, hidden_length)] * 4 + \
           [(hidden_length, code_length)]
    params = []
    for (fan_in, fan_out) in dims:
        key, kw, kb = jax.random.split(key, 3)
        bound = 1.0 / (fan_in ** 0.5)
        w = jax.random.uniform(kw, (fan_in, fan_out), jnp.float32, -bound, bound)
        b = jax.random.uniform(kb, (fan_out,), jnp.float32, -bound, bound)
        params.append((w, b))
    return params


def reference_forward(x, params):
    h = x
    for i, (w, b) in enumerate(params):
        h = h @ w + b
        if i < len(params) - 1:
            h = jnp.maximum(h, 0.0)
    return h


if __name__ == "__main__":
    params_length = 16
    code_length = 8
    hidden_length = 32
    batch = 64          # small, but >1 batch tile so the grid is exercised

    key = jax.random.PRNGKey(0)
    kx, kp = jax.random.split(key)
    x = jax.random.normal(kx, (batch, params_length), jnp.float32)
    params = init_params(kp, params_length, code_length, hidden_length)

    out = predictor_forward(x, params, block_b=32)   # grid = (2,)
    out = jax.block_until_ready(out)

    ref = reference_forward(x, params)
    assert out.shape == (batch, code_length)
    assert jnp.allclose(out, ref, atol=1e-4, rtol=1e-4), "mismatch vs. reference"

    print("KERNEL_OK")
</pallas_src>

<mosaic_0001>
module attributes {stable_mosaic.version = 11 : i64} {
  func.func @predictor_kernel(%arg0: i32, %arg1: memref<32x16xf32, #tpu.memory_space<vmem>>, %arg2: memref<16x32xf32, #tpu.memory_space<vmem>>, %arg3: memref<5x32xf32, #tpu.memory_space<vmem>>, %arg4: memref<4x32x32xf32, #tpu.memory_space<vmem>>, %arg5: memref<32x8xf32, #tpu.memory_space<vmem>>, %arg6: memref<1x8xf32, #tpu.memory_space<vmem>>, %arg7: memref<32x8xf32, #tpu.memory_space<vmem>>) attributes {dimension_semantics = [#tpu.dimension_semantics<parallel>], iteration_bounds = array<i64: 2>, scalar_prefetch = 0 : i64, scratch_operands = 0 : i64, tpu.core_type = #tpu.core_type<tc>, window_params = [{transform_indices = @transform_0, window_bounds = array<i64: 32, 16>}, {pipeline_mode = #tpu.pipeline_mode<synchronous>, transform_indices = @transform_1, window_bounds = array<i64: 16, 32>}, {pipeline_mode = #tpu.pipeline_mode<synchronous>, transform_indices = @transform_2, window_bounds = array<i64: 5, 32>}, {pipeline_mode = #tpu.pipeline_mode<synchronous>, transform_indices = @transform_3, window_bounds = array<i64: 4, 32, 32>}, {pipeline_mode = #tpu.pipeline_mode<synchronous>, transform_indices = @transform_4, window_bounds = array<i64: 32, 8>}, {pipeline_mode = #tpu.pipeline_mode<synchronous>, transform_indices = @transform_5, window_bounds = array<i64: 1, 8>}, {transform_indices = @transform_6, window_bounds = array<i64: 32, 8>}]} {
    %c0 = arith.constant 0 : index
    %c0_0 = arith.constant 0 : index
    %0 = vector.load %arg1[%c0, %c0_0] : memref<32x16xf32, #tpu.memory_space<vmem>>, vector<32x16xf32>
    %c0_1 = arith.constant 0 : index
    %c0_2 = arith.constant 0 : index
    %1 = vector.load %arg3[%c0_1, %c0_2] : memref<5x32xf32, #tpu.memory_space<vmem>>, vector<5x32xf32>
    %c0_3 = arith.constant 0 : index
    %c0_4 = arith.constant 0 : index
    %2 = vector.load %arg2[%c0_3, %c0_4] : memref<16x32xf32, #tpu.memory_space<vmem>>, vector<16x32xf32>
    %cst = arith.constant dense<0.000000e+00> : vector<32x32xf32>
    %3 = tpu.matmul %0, %2, %cst {dimension_numbers = #tpu.dot_dimension_numbers<[1], [0], [0], [1], [0, 0, 1, 1], [], []>} : vector<32x16xf32>, vector<16x32xf32>, vector<32x32xf32> -> vector<32x32xf32>
    %4 = vector.extract_strided_slice %1 {offsets = [0, 0], sizes = [1, 32], strides = [1, 1]} : vector<5x32xf32> to vector<1x32xf32>
    %5 = vector.broadcast %4 : vector<1x32xf32> to vector<32x32xf32>
    %6 = arith.addf %3, %5 : vector<32x32xf32>
    %cst_5 = arith.constant 0.000000e+00 : f32
    %7 = vector.broadcast %cst_5 : f32 to vector<32x32xf32>
    %8 = arith.maximumf %6, %7 : vector<32x32xf32>
    %c0_6 = arith.constant 0 : index
    %c0_7 = arith.constant 0 : index
    %c0_8 = arith.constant 0 : index
    %9 = vector.load %arg4[%c0_6, %c0_7, %c0_8] : memref<4x32x32xf32, #tpu.memory_space<vmem>>, vector<1x32x32xf32>
    %10 = vector.shape_cast %9 : vector<1x32x32xf32> to vector<32x32xf32>
    %cst_9 = arith.constant dense<0.000000e+00> : vector<32x32xf32>
    %11 = tpu.matmul %8, %10, %cst_9 {dimension_numbers = #tpu.dot_dimension_numbers<[1], [0], [0], [1], [0, 0, 1, 1], [], []>} : vector<32x32xf32>, vector<32x32xf32>, vector<32x32xf32> -> vector<32x32xf32>
    %12 = vector.extract_strided_slice %1 {offsets = [1, 0], sizes = [1, 32], strides = [1, 1]} : vector<5x32xf32> to vector<1x32xf32>
    %13 = vector.broadcast %12 : vector<1x32xf32> to vector<32x32xf32>
    %14 = arith.addf %11, %13 : vector<32x32xf32>
    %cst_10 = arith.constant 0.000000e+00 : f32
    %15 = vector.broadcast %cst_10 : f32 to vector<32x32xf32>
    %16 = arith.maximumf %14, %15 : vector<32x32xf32>
    %c1 = arith.constant 1 : index
    %c0_11 = arith.constant 0 : index
    %c0_12 = arith.constant 0 : index
    %17 = vector.load %arg4[%c1, %c0_11, %c0_12] : memref<4x32x32xf32, #tpu.memory_space<vmem>>, vector<1x32x32xf32>
    %18 = vector.shape_cast %17 : vector<1x32x32xf32> to vector<32x32xf32>
    %cst_13 = arith.constant dense<0.000000e+00> : vector<32x32xf32>
    %19 = tpu.matmul %16, %18, %cst_13 {dimension_numbers = #tpu.dot_dimension_numbers<[1], [0], [0], [1], [0, 0, 1, 1], [], []>} : vector<32x32xf32>, vector<32x32xf32>, vector<32x32xf32> -> vector<32x32xf32>
    %20 = vector.extract_strided_slice %1 {offsets = [2, 0], sizes = [1, 32], strides = [1, 1]} : vector<5x32xf32> to vector<1x32xf32>
    %21 = vector.broadcast %20 : vector<1x32xf32> to vector<32x32xf32>
    %22 = arith.addf %19, %21 : vector<32x32xf32>
    %cst_14 = arith.constant 0.000000e+00 : f32
    %23 = vector.broadcast %cst_14 : f32 to vector<32x32xf32>
    %24 = arith.maximumf %22, %23 : vector<32x32xf32>
    %c2 = arith.constant 2 : index
    %c0_15 = arith.constant 0 : index
    %c0_16 = arith.constant 0 : index
    %25 = vector.load %arg4[%c2, %c0_15, %c0_16] : memref<4x32x32xf32, #tpu.memory_space<vmem>>, vector<1x32x32xf32>
    %26 = vector.shape_cast %25 : vector<1x32x32xf32> to vector<32x32xf32>
    %cst_17 = arith.constant dense<0.000000e+00> : vector<32x32xf32>
    %27 = tpu.matmul %24, %26, %cst_17 {dimension_numbers = #tpu.dot_dimension_numbers<[1], [0], [0], [1], [0, 0, 1, 1], [], []>} : vector<32x32xf32>, vector<32x32xf32>, vector<32x32xf32> -> vector<32x32xf32>
    %28 = vector.extract_strided_slice %1 {offsets = [3, 0], sizes = [1, 32], strides = [1, 1]} : vector<5x32xf32> to vector<1x32xf32>
    %29 = vector.broadcast %28 : vector<1x32xf32> to vector<32x32xf32>
    %30 = arith.addf %27, %29 : vector<32x32xf32>
    %cst_18 = arith.constant 0.000000e+00 : f32
    %31 = vector.broadcast %cst_18 : f32 to vector<32x32xf32>
    %32 = arith.maximumf %30, %31 : vector<32x32xf32>
    %c3 = arith.constant 3 : index
    %c0_19 = arith.constant 0 : index
    %c0_20 = arith.constant 0 : index
    %33 = vector.load %arg4[%c3, %c0_19, %c0_20] : memref<4x32x32xf32, #tpu.memory_space<vmem>>, vector<1x32x32xf32>
    %34 = vector.shape_cast %33 : vector<1x32x32xf32> to vector<32x32xf32>
    %cst_21 = arith.constant dense<0.000000e+00> : vector<32x32xf32>
    %35 = tpu.matmul %32, %34, %cst_21 {dimension_numbers = #tpu.dot_dimension_numbers<[1], [0], [0], [1], [0, 0, 1, 1], [], []>} : vector<32x32xf32>, vector<32x32xf32>, vector<32x32xf32> -> vector<32x32xf32>
    %36 = vector.extract_strided_slice %1 {offsets = [4, 0], sizes = [1, 32], strides = [1, 1]} : vector<5x32xf32> to vector<1x32xf32>
    %37 = vector.broadcast %36 : vector<1x32xf32> to vector<32x32xf32>
    %38 = arith.addf %35, %37 : vector<32x32xf32>
    %cst_22 = arith.constant 0.000000e+00 : f32
    %39 = vector.broadcast %cst_22 : f32 to vector<32x32xf32>
    %40 = arith.maximumf %38, %39 : vector<32x32xf32>
    %c0_23 = arith.constant 0 : index
    %c0_24 = arith.constant 0 : index
    %41 = vector.load %arg5[%c0_23, %c0_24] : memref<32x8xf32, #tpu.memory_space<vmem>>, vector<32x8xf32>
    %cst_25 = arith.constant dense<0.000000e+00> : vector<32x8xf32>
    %42 = tpu.matmul %40, %41, %cst_25 {dimension_numbers = #tpu.dot_dimension_numbers<[1], [0], [0], [1], [0, 0, 1, 1], [], []>} : vector<32x32xf32>, vector<32x8xf32>, vector<32x8xf32> -> vector<32x8xf32>
    %c0_26 = arith.constant 0 : index
    %c0_27 = arith.constant 0 : index
    %43 = vector.load %arg6[%c0_26, %c0_27] : memref<1x8xf32, #tpu.memory_space<vmem>>, vector<1x8xf32>
    %44 = vector.broadcast %43 : vector<1x8xf32> to vector<32x8xf32>
    %45 = arith.addf %42, %44 : vector<32x8xf32>
    %c0_28 = arith.constant 0 : index
    %c0_29 = arith.constant 0 : index
    %46 = vector.load %arg7[%c0_28, %c0_29] : memref<32x8xf32, #tpu.memory_space<vmem>>, vector<32x8xf32>
    tpu.vector_store %arg7[%c0_28, %c0_29], %45 {strides = array<i32>} : memref<32x8xf32, #tpu.memory_space<vmem>>, vector<32x8xf32>,
    return
  }
  func.func @transform_0(%arg0: i32) -> (i32, i32) {
    %c0_i32 = arith.constant 0 : i32
    %c0_i32_0 = arith.constant 0 : i32
    return %arg0, %c0_i32 : i32, i32
  }
  func.func @transform_1(%arg0: i32) -> (i32, i32) {
    %c0_i32 = arith.constant 0 : i32
    %c0_i32_0 = arith.constant 0 : i32
    %c0_i32_1 = arith.constant 0 : i32
    return %c0_i32, %c0_i32_0 : i32, i32
  }
  func.func @transform_2(%arg0: i32) -> (i32, i32) {
    %c0_i32 = arith.constant 0 : i32
    %c0_i32_0 = arith.constant 0 : i32
    %c0_i32_1 = arith.constant 0 : i32
    return %c0_i32, %c0_i32_0 : i32, i32
  }
  func.func @transform_3(%arg0: i32) -> (i32, i32, i32) {
    %c0_i32 = arith.constant 0 : i32
    %c0_i32_0 = arith.constant 0 : i32
    %c0_i32_1 = arith.constant 0 : i32
    %c0_i32_2 = arith.constant 0 : i32
    return %c0_i32, %c0_i32_0, %c0_i32_1 : i32, i32, i32
  }
  func.func @transform_4(%arg0: i32) -> (i32, i32) {
    %c0_i32 = arith.constant 0 : i32
    %c0_i32_0 = arith.constant 0 : i32
    %c0_i32_1 = arith.constant 0 : i32
    return %c0_i32, %c0_i32_0 : i32, i32
  }
  func.func @transform_5(%arg0: i32) -> (i32, i32) {
    %c0_i32 = arith.constant 0 : i32
    %c0_i32_0 = arith.constant 0 : i32
    %c0_i32_1 = arith.constant 0 : i32
    return %c0_i32, %c0_i32_0 : i32, i32
  }
  func.func @transform_6(%arg0: i32) -> (i32, i32) {
    %c0_i32 = arith.constant 0 : i32
    %c0_i32_0 = arith.constant 0 : i32
    return %arg0, %c0_i32 : i32, i32
  }
}

</mosaic_0001>

<llo_original>
// kernel: tpu_custom_call.1
$region0: #{tpu_custom_call.1}
  #allocation0 [shape = 'u32[]', space=smem, size = 0x4, offset = 0x4, fixed_abs, tag = 'smem constant byte address 0x4 - core index']
  #allocation1 [shape = 'u32[144,128]{1,0:T(1,128)}', space=vmem, size = 0x12000, scoped, tag = 'internal scratch']
  %s0 = inlined_call_operand.vmem [shape: f32[64,16], index: 0, kind: input, shape index: {}]
  %s1 = inlined_call_operand.hbm [shape: f32[16,32], index: 1, kind: input, shape index: {}]
  %s2 = inlined_call_operand.hbm [shape: f32[5,32], index: 2, kind: input, shape index: {}]
  %s3 = inlined_call_operand.vmem [shape: f32[4,32,32], index: 3, kind: input, shape index: {}]
  %s4 = inlined_call_operand.vmem [shape: f32[32,8], index: 4, kind: input, shape index: {}]
  %s5 = inlined_call_operand.vmem [shape: f32[1,8], index: 5, kind: input, shape index: {}]
  %s6 = inlined_call_operand.vmem [shape: f32[64,8], index: 6, kind: output, shape index: {}]
  %s7 = sld [smem:[#allocation0]]
  $region65: #{tpu_custom_call.1} parent=0
    _
  %s9 = ssub.s32 1, %s7
  %s10 = scalar_select 0, %s9, %s7
  $region1: #{tpu_custom_call.1} parent=0
    #allocation2 [shape = 'u8[8192]{0}', space=vmem, size = 0x2000, scoped, tag = 'input window, operand 1, single buffered']
    #allocation3 [shape = 's32[2]{0}', space=sflag, size = 0x8, scoped, tag = 'scoped memory for tpu_custom_call.1']
    #allocation4 [shape = 'u8[4096]{0}', space=vmem, size = 0x1000, scoped, tag = 'input window, operand 2, single buffered']
    #allocation5 [shape = 's32[1]{0}', space=sflag, size = 0x4, scoped, tag = 'scoped memory for tpu_custom_call.1']
    %11 = vsyncpa [#allocation3], 0
    %12 = vsyncpa [#allocation5], 0
    loop: start=0, step=1, limit=4
    $region2: #{tpu_custom_call.1} parent=1 // loop_pre_header
      _
    $region3: #{tpu_custom_call.1} parent=1 // loop_header
      %s14 = sphi 0, %s18
      %p15 = scmp.ge.s32.totalorder %s14, 4
      %s24 = sphi 0, %s26
      %s27 = sphi 0, %s24
      %s28 = sphi 0, %s27
      %s44 = sphi 0, %s28
      %s48 = sphi 0, %s48
      %s50 = sphi 0, %s48
      %s51 = sphi 0, %s50
      %s65 = sphi 0, %s51
      %s69 = sphi 0, %s69
      %s71 = sphi 0, %s69
      %s72 = sphi 0, %s71
      %s86 = sphi 0, %s72
      %s90 = sphi 0, %s90
      %s92 = sphi 0, %s90
      %s93 = sphi 0, %s92
      %s107 = sphi 0, %s93
      %s111 = sphi 0, %s111
      %s113 = sphi 0, %s111
      %s114 = sphi 0, %s113
      %s128 = sphi 0, %s114
      %s132 = sphi 0, %s132
      %s134 = sphi 0, %s132
      %s135 = sphi 0, %s134
      %s149 = sphi 0, %s135
      %s155 = sphi 0, %s157
      %s158 = sphi 0, %s155
      %s159 = sphi 0, %s158
      %s175 = sphi 0, %s159
    $region4: #{tpu_custom_call.1} parent=1 // loop_header_branch
      %17 = sbr.rel (%p15) target = $region8
    $region5: #{tpu_custom_call.1} parent=1 // loop_body
      %s19 = ssub.s32 %s14, 1
      %s20 = ssub.s32 %s14, 2
      %s21 = sadd.s32 %s14, 1
      %s22 = ssub.s32 %s14, %s21
      %p23 = scmp.eq.s32.totalorder %s22, 0
      %s25 = sadd.s32 %s24, 1
      %s26 = scalar_select %p23, %s24, %s25
      %p29 = pneg %p23
      %p30 = scmp.eq.s32.totalorder %s14, 1
      %p31 = por %p29, %p30
      %p32 = scmp.ne.s32.totalorder %s24, %s27
      %p33 = scmp.eq.s32.totalorder %s14, 0
      %p34 = por %p32, %p33
      %p35 = scmp.ne.s32.totalorder %s24, %s27
      %p36 = scmp.eq.s32.totalorder %s19, 1
      %p37 = por %p35, %p36
      %p38 = scmp.ne.s32.totalorder %s27, %s28
      %p39 = scmp.eq.s32.totalorder %s19, 0
      %p40 = por %p38, %p39
      %p41 = scmp.ne.s32.totalorder %s27, %s28
      %p42 = scmp.eq.s32.totalorder %s20, 1
      %p43 = por %p41, %p42
      %p45 = scmp.ne.s32.totalorder %s28, %s44
      %p46 = scmp.eq.s32.totalorder %s20, 0
      %p47 = por %p45, %p46
      %s49 = sadd.s32 %s48, 1
      %p52 = scmp.eq.s32.totalorder %s14, 1
      %p53 = scmp.ne.s32.totalorder %s48, %s50
      %p54 = scmp.eq.s32.totalorder %s14, 0
      %p55 = por %p53, %p54
      %p56 = scmp.ne.s32.totalorder %s48, %s50
      %p57 = scmp.eq.s32.totalorder %s19, 1
      %p58 = por %p56, %p57
      %p59 = scmp.ne.s32.totalorder %s50, %s51
      %p60 = scmp.eq.s32.totalorder %s19, 0
      %p61 = por %p59, %p60
      %p62 = scmp.ne.s32.totalorder %s50, %s51
      %p63 = scmp.eq.s32.totalorder %s20, 1
      %p64 = por %p62, %p63
      %p66 = scmp.ne.s32.totalorder %s51, %s65
      %p67 = scmp.eq.s32.totalorder %s20, 0
      %p68 = por %p66, %p67
      %s70 = sadd.s32 %s69, 1
      %p73 = scmp.eq.s32.totalorder %s14, 1
      %p74 = scmp.ne.s32.totalorder %s69, %s71
      %p75 = scmp.eq.s32.totalorder %s14, 0
      %p76 = por %p74, %p75
      %p77 = scmp.ne.s32.totalorder %s69, %s71
      %p78 = scmp.eq.s32.totalorder %s19, 1
      %p79 = por %p77, %p78
      %p80 = scmp.ne.s32.totalorder %s71, %s72
      %p81 = scmp.eq.s32.totalorder %s19, 0
      %p82 = por %p80, %p81
      %p83 = scmp.ne.s32.totalorder %s71, %s72
      %p84 = scmp.eq.s32.totalorder %s20, 1
      %p85 = por %p83, %p84
      %p87 = scmp.ne.s32.totalorder %s72, %s86
      %p88 = scmp.eq.s32.totalorder %s20, 0
      %p89 = por %p87, %p88
      %s91 = sadd.s32 %s90, 1
      %p94 = scmp.eq.s32.totalorder %s14, 1
      %p95 = scmp.ne.s32.totalorder %s90, %s92
      %p96 = scmp.eq.s32.totalorder %s14, 0
      %p97 = por %p95, %p96
      %p98 = scmp.ne.s32.totalorder %s90, %s92
      %p99 = scmp.eq.s32.totalorder %s19, 1
      %p100 = por %p98, %p99
      %p101 = scmp.ne.s32.totalorder %s92, %s93
      %p102 = scmp.eq.s32.totalorder %s19, 0
      %p103 = por %p101, %p102
      %p104 = scmp.ne.s32.totalorder %s92, %s93
      %p105 = scmp.eq.s32.totalorder %s20, 1
      %p106 = por %p104, %p105
      %p108 = scmp.ne.s32.totalorder %s93, %s107
      %p109 = scmp.eq.s32.totalorder %s20, 0
      %p110 = por %p108, %p109
      %s112 = sadd.s32 %s111, 1
      %p115 = scmp.eq.s32.totalorder %s14, 1
      %p116 = scmp.ne.s32.totalorder %s111, %s113
      %p117 = scmp.eq.s32.totalorder %s14, 0
      %p118 = por %p116, %p117
      %p119 = scmp.ne.s32.totalorder %s111, %s113
      %p120 = scmp.eq.s32.totalorder %s19, 1
      %p121 = por %p119, %p120
      %p122 = scmp.ne.s32.totalorder %s113, %s114
      %p123 = scmp.eq.s32.totalorder %s19, 0
      %p124 = por %p122, %p123
      %p125 = scmp.ne.s32.totalorder %s113, %s114
      %p126 = scmp.eq.s32.totalorder %s20, 1
      %p127 = por %p125, %p126
      %p129 = scmp.ne.s32.totalorder %s114, %s128
      %p130 = scmp.eq.s32.totalorder %s20, 0
      %p131 = por %p129, %p130
      %s133 = sadd.s32 %s132, 1
      %p136 = scmp.eq.s32.totalorder %s14, 1
      %p137 = scmp.ne.s32.totalorder %s132, %s134
      %p138 = scmp.eq.s32.totalorder %s14, 0
      %p139 = por %p137, %p138
      %p140 = scmp.ne.s32.totalorder %s132, %s134
      %p141 = scmp.eq.s32.totalorder %s19, 1
      %p142 = por %p140, %p141
      %p143 = scmp.ne.s32.totalorder %s134, %s135
      %p144 = scmp.eq.s32.totalorder %s19, 0
      %p145 = por %p143, %p144
      %p146 = scmp.ne.s32.totalorder %s134, %s135
      %p147 = scmp.eq.s32.totalorder %s20, 1
      %p148 = por %p146, %p147
      %p150 = scmp.ne.s32.totalorder %s135, %s149
      %p151 = scmp.eq.s32.totalorder %s20, 0
      %p152 = por %p150, %p151
      %s153 = ssub.s32 %s14, %s21
      %p154 = scmp.eq.s32.totalorder %s153, 0
      %s156 = sadd.s32 %s155, 1
      %s157 = scalar_select %p154, %s155, %s156
      %p160 = pneg %p154
      %p161 = scmp.eq.s32.totalorder %s14, 1
      %p162 = por %p160, %p161
      %p163 = scmp.ne.s32.totalorder %s155, %s158
      %p164 = scmp.eq.s32.totalorder %s14, 0
      %p165 = por %p163, %p164
      %p166 = scmp.ne.s32.totalorder %s155, %s158
      %p167 = scmp.eq.s32.totalorder %s19, 1
      %p168 = por %p166, %p167
      %p169 = scmp.ne.s32.totalorder %s158, %s159
      %p170 = scmp.eq.s32.totalorder %s19, 0
      %p171 = por %p169, %p170
      %p172 = scmp.ne.s32.totalorder %s158, %s159
      %p173 = scmp.eq.s32.totalorder %s20, 1
      %p174 = por %p172, %p173
      %p176 = scmp.ne.s32.totalorder %s159, %s175
      %p177 = scmp.eq.s32.totalorder %s20, 0
      %p178 = por %p176, %p177
      %p179 = scmp.le.s32.totalorder 1, %s14
      %p180 = scmp.lt.s32.totalorder %s14, 3
      %p181 = pnand %p179, %p180
      %p182 = pneg %p181
      // Predicated region
      $region9: #{tpu_custom_call.1} parent=5 // pred_check
        _
      $region10: #{tpu_custom_call.1} parent=5 // pred_check_branch
        %184 = sbr.rel (%p181) target = $region12
      $region11: #{tpu_custom_call.1} parent=5 // pred_region
        %s185 = ssub.s32 %s14, 1
        // Predicated region
        $region13: #{tpu_custom_call.1} parent=11 // pred_check
          %p186 = pneg %p61
        $region14: #{tpu_custom_call.1} parent=11 // pred_check_branch
          %188 = sbr.rel (%p186) target = $region16
        $region15: #{tpu_custom_call.1} parent=11 // pred_region
          %s190 = ssub.s32 256, 256
          %191 = vsyncadd [#allocation3], %s190
          %s192 = sshll.u32 [#allocation2], 4
          %s193 = int_to_ptr.vmem [resolvable:$true] %s192
          %198 = dma.hbm_to_vmem [thread:$0]  %s1, 256, %s193, [#allocation3], 128, 128, 8
        $region16: #{tpu_custom_call.1} parent=11 // pred_fallthru
          _
        // Predicated region
        $region17: #{tpu_custom_call.1} parent=11 // pred_check
          %p199 = pneg %p82
        $region18: #{tpu_custom_call.1} parent=11 // pred_check_branch
          %201 = sbr.rel (%p199) target = $region20
        $region19: #{tpu_custom_call.1} parent=11 // pred_region
          %s203 = ssub.s32 128, 128
          %204 = vsyncadd [#allocation5], %s203
          %s206 = sshll.u32 [#allocation4], 4
          %s207 = int_to_ptr.vmem [resolvable:$true] %s206
          %209 = dma.hbm_to_vmem [thread:$0]  %s2, 128, %s207, [#allocation5]
        $region20: #{tpu_custom_call.1} parent=11 // pred_fallthru
          _
        // Predicated region
        $region21: #{tpu_custom_call.1} parent=11 // pred_check
          %p210 = pneg %p103
        $region22: #{tpu_custom_call.1} parent=11 // pred_check_branch
          %212 = sbr.rel (%p210) target = $region24
        $region23: #{tpu_custom_call.1} parent=11 // pred_region
          _
        $region24: #{tpu_custom_call.1} parent=11 // pred_fallthru
          _
        // Predicated region
        $region25: #{tpu_custom_call.1} parent=11 // pred_check
          %p213 = pneg %p124
        $region26: #{tpu_custom_call.1} parent=11 // pred_check_branch
          %215 = sbr.rel (%p213) target = $region28
        $region27: #{tpu_custom_call.1} parent=11 // pred_region
          _
        $region28: #{tpu_custom_call.1} parent=11 // pred_fallthru
          _
        // Predicated region
        $region29: #{tpu_custom_call.1} parent=11 // pred_check
          %p216 = pneg %p145
        $region30: #{tpu_custom_call.1} parent=11 // pred_check_branch
          %218 = sbr.rel (%p216) target = $region32
        $region31: #{tpu_custom_call.1} parent=11 // pred_region
          _
        $region32: #{tpu_custom_call.1} parent=11 // pred_fallthru
          _
      $region12: #{tpu_custom_call.1} parent=5 // pred_fallthru
        _
      %p219 = scmp.lt.s32.totalorder %s14, 2
      // Predicated region
      $region33: #{tpu_custom_call.1} parent=5 // pred_check
        %p220 = pneg %p219
      $region34: #{tpu_custom_call.1} parent=5 // pred_check_branch
        %222 = sbr.rel (%p220) target = $region36
      $region35: #{tpu_custom_call.1} parent=5 // pred_region
        // Predicated region
        $region37: #{tpu_custom_call.1} parent=35 // pred_check
          %p223 = pneg %p34
        $region38: #{tpu_custom_call.1} parent=35 // pred_check_branch
          %225 = sbr.rel (%p223) target = $region40
        $region39: #{tpu_custom_call.1} parent=35 // pred_region
          %s226 = smul.u32 4, %s14
          %p227 = scmp.lt.s32.totalorder %s226, 7
          %s228 = scalar_select %p227, %s226, 7
          %s229 = smul.addr %s228, 8
          %s230 = scalar_lea.vmem %s0, %s229
          %s231 = smul.u32 4, %s14
        $region40: #{tpu_custom_call.1} parent=35 // pred_fallthru
          _
      $region36: #{tpu_custom_call.1} parent=5 // pred_fallthru
        _
      %p232 = scmp.le.s32.totalorder 1, %s14
      %p233 = scmp.lt.s32.totalorder %s14, 3
      %p234 = pnand %p232, %p233
      %p235 = pneg %p234
      // Predicated region
      $region41: #{tpu_custom_call.1} parent=5 // pred_check
        _
      $region42: #{tpu_custom_call.1} parent=5 // pred_check_branch
        %237 = sbr.rel (%p234) target = $region44
      $region43: #{tpu_custom_call.1} parent=5 // pred_region
        %s238 = ssub.s32 %s14, 1
        // Predicated region
        $region45: #{tpu_custom_call.1} parent=43 // pred_check
          %p239 = pneg %p61
        $region46: #{tpu_custom_call.1} parent=43 // pred_check_branch
          %241 = sbr.rel (%p239) target = $region48
        $region47: #{tpu_custom_call.1} parent=43 // pred_region
          %242 = dma.done [#allocation3], 256
        $region48: #{tpu_custom_call.1} parent=43 // pred_fallthru
          _
        // Predicated region
        $region49: #{tpu_custom_call.1} parent=43 // pred_check
          %p243 = pneg %p82
        $region50: #{tpu_custom_call.1} parent=43 // pred_check_branch
          %245 = sbr.rel (%p243) target = $region52
        $region51: #{tpu_custom_call.1} parent=43 // pred_region
          %246 = dma.done [#allocation5], 128
        $region52: #{tpu_custom_call.1} parent=43 // pred_fallthru
          _
        %s247 = smul.u32 4, %s19
        %p248 = scmp.lt.s32.totalorder %s247, 7
        %s249 = scalar_select %p248, %s247, 7
        %s250 = smul.addr %s249, 8
        %s251 = scalar_lea.vmem %s0, %s250
        %p252 = pneg %p40
        %p253 = pneg %p37
        %p254 = pneg %p61
        %p255 = pneg %p58
        %p256 = pneg %p82
        %p257 = pneg %p79
        %p258 = pneg %p103
        %p259 = pneg %p100
        %p260 = pneg %p124
        %p261 = pneg %p121
        %p262 = pneg %p145
        %p263 = pneg %p142
        %p264 = pneg %p171
        %p265 = pneg %p168
        %s266 = smul.u32 4, %s19
        %p267 = scmp.lt.s32.totalorder %s266, 7
        %s268 = scalar_select %p267, %s266, 7
        %s269 = smul.addr %s268, 8
        %s270 = scalar_lea.vmem %s6, %s269
        %s271 = smul.u32 4, %s19
        %p272 = scmp.lt.s32.totalorder %s271, 7
        %s273 = scalar_select %p272, %s271, 7
        %s274 = smul.addr %s273, 8
        %s275 = scalar_lea.vmem %s0, %s274
        %s276 = smul.u32 4, %s19
        %s277 = smul.u32 4, %s19
        %p278 = scmp.lt.s32.totalorder %s277, 7
        %s279 = scalar_select %p278, %s277, 7
        %s280 = smul.addr %s279, 8
        %s281 = scalar_lea.vmem %s6, %s280
        %s282 = smul.u32 4, %s19
        %v283 = vld [vmem:[%s275] sm:$0xff]
        %v284 = vld [vmem:[%s275 + $0x8] sm:$0xff]
        %v285 = vld [vmem:[%s275 + $0x10] sm:$0xff]
        %v286 = vld [vmem:[%s275 + $0x18] sm:$0xff]
        %v287 = vld [vmem:[#allocation4] sm:$0x1f]
        %v288 = vld [vmem:[#allocation2] sm:$0xff]
        %v289 = vld [vmem:[#allocation2 + $0x8] sm:$0xff]
        %v290 = vlaneseq
        %v291 = vshrl.u32 %v290, 7
        %v292 = vsub.s32 0, %v291
        %v293 = vrot.slane %v287, %v292
        %vm294 = vcmask 130048
        %v296 = vsel %vm294, %v283, 0
        %v299 = vsel %vm294, %v284, 0
        %v302 = vsel %vm294, %v285, 0
        %v305 = vsel %vm294, %v286, 0
        %307 = vmatprep.subr.mxu0 0.0
        %308 = vmatpush1.msra.mxu0 %v288
        %309 = vmatprep.subr.mxu0 0.0
        %310 = vmatpush1.msra.mxu0 %v289
        %311 = vmatprep.subr.mxu0 0.0
        %312 = vmatpush1.msra.mxu0 0.0
        %313 = vmatprep.subr.mxu0 0.0
        %314 = vmatpush1.msra.mxu0 0.0
        %315 = vmatprep.subr.mxu0 0.0
        %316 = vmatpush1.msra.mxu0 0.0
        %317 = vmatprep.subr.mxu0 0.0
        %318 = vmatpush1.msra.mxu0 0.0
        %319 = vmatprep.subr.mxu0 0.0
        %320 = vmatpush1.msra.mxu0 0.0
        %321 = vmatprep.subr.mxu0 0.0
        %322 = vmatpush1.msra.mxu0 0.0
        %323 = vmatprep.subr.mxu0 0.0
        %324 = vmatpush1.msra.mxu0 0.0
        %325 = vmatprep.subr.mxu0 0.0
        %326 = vmatpush1.msra.mxu0 0.0
        %327 = vmatprep.subr.mxu0 0.0
        %328 = vmatpush1.msra.mxu0 0.0
        %329 = vmatprep.subr.mxu0 0.0
        %330 = vmatpush1.msra.mxu0 0.0
        %331 = vmatprep.subr.mxu0 0.0
        %332 = vmatpush1.msra.mxu0 0.0
        %333 = vmatprep.subr.mxu0 0.0
        %334 = vmatpush1.msra.mxu0 0.0
        %335 = vmatprep.subr.mxu0 0.0
        %336 = vmatpush1.msra.mxu0 0.0
        %337 = vmatprep.subr.mxu0 0.0
        %338 = vmatpush1.msra.mxu0 0.0
        %339 = vmatprep.subr.mxu0 0.0
        %340 = vmatpush1.msra.mxu0 0.0
        %341 = vmatprep.subr.mxu0 0.0
        %342 = vmatpush1.msra.mxu0 0.0
        %343 = vmatprep.subr.mxu0 0.0
        %344 = vmatpush1.msra.mxu0 0.0
        %345 = vmatprep.subr.mxu0 0.0
        %346 = vmatpush1.msra.mxu0 0.0
        %347 = vmatprep.subr.mxu0 0.0
        %348 = vmatpush1.msra.mxu0 0.0
        %349 = vmatprep.subr.mxu0 0.0
        %350 = vmatpush1.msra.mxu0 0.0
        %351 = vmatprep.subr.mxu0 0.0
        %352 = vmatpush1.msra.mxu0 0.0
        %353 = vmatprep.subr.mxu0 0.0
        %354 = vmatpush1.msra.mxu0 0.0
        %355 = vmatprep.subr.mxu0 0.0
        %356 = vmatpush1.msra.mxu0 0.0
        %357 = vmatprep.subr.mxu0 0.0
        %358 = vmatpush1.msra.mxu0 0.0
        %359 = vmatprep.subr.mxu0 0.0
        %360 = vmatpush1.msra.mxu0 0.0
        %361 = vmatprep.subr.mxu0 0.0
        %362 = vmatpush1.msra.mxu0 0.0
        %363 = vmatprep.subr.mxu0 0.0
        %364 = vmatpush1.msra.mxu0 0.0
        %365 = vmatprep.subr.mxu0 0.0
        %366 = vmatpush1.msra.mxu0 0.0
        %367 = vmatprep.subr.mxu0 0.0
        %368 = vmatpush1.msra.mxu0 0.0
        %369 = vmatprep.subr.mxu0 0.0
        %370 = vmatpush1.msra.mxu0 0.0
        %371 = vmatprep.mubr.f32.mxu0 0.0
        %372 = vmatmul.mubr.f32.gmra.mrb[0].mxu0 %v296
        %v373 = vpop.f32.mrb[0].mxu0
        %v374 = vadd.f32 %v293, %v373
        %v375 = vpop.f32.mrb[0].mxu0
        %376 = vmatprep.mubr.f32.mxu0 0.0
        %377 = vmatmul.mubr.f32.gmra.mrb[0].mxu0 %v299
        %v378 = vpop.f32.mrb[0].mxu0
        %v379 = vadd.f32 %v293, %v378
        %v380 = vpop.f32.mrb[0].mxu0
        %381 = vmatprep.mubr.f32.mxu0 0.0
        %382 = vmatmul.mubr.f32.gmra.mrb[0].mxu0 %v302
        %v383 = vpop.f32.mrb[0].mxu0
        %v384 = vadd.f32 %v293, %v383
        %v385 = vpop.f32.mrb[0].mxu0
        %386 = vmatprep.mubr.f32.mxu0 0.0
        %387 = vmatmul.mubr.f32.gmra.mrb[0].mxu0 %v305
        %v388 = vpop.f32.mrb[0].mxu0
        %v389 = vadd.f32 %v293, %v388
        %v390 = vpop.f32.mrb[0].mxu0
        %391 = vdwg.mxu0
        %v392 = vmax.f32 %v374, 0.0
        %v393 = vmax.f32 %v379, 0.0
        %v394 = vmax.f32 %v384, 0.0
        %v395 = vmax.f32 %v389, 0.0
        %v396 = vld [vmem:[%s3] sm:$0xff]
        %v397 = vld [vmem:[%s3 + $0x8] sm:$0xff]
        %v398 = vld [vmem:[%s3 + $0x10] sm:$0xff]
        %v399 = vld [vmem:[%s3 + $0x18] sm:$0xff]
        %v400 = vlaneseq
        %v401 = vshrl.u32 %v400, 7
        %v402 = vsub.s32 1, %v401
        %v403 = vrot.slane %v287, %v402
        %vm404 = vcmask 261120
        %v406 = vsel %vm404, %v392, 0
        %v409 = vsel %vm404, %v393, 0
        %v412 = vsel %vm404, %v394, 0
        %v415 = vsel %vm404, %v395, 0
        %417 = vmatprep.subr.mxu0 0.0
        %418 = vmatpush1.msra.mxu0 %v396
        %419 = vmatprep.subr.mxu0 0.0
        %420 = vmatpush1.msra.mxu0 %v397
        %421 = vmatprep.subr.mxu0 0.0
        %422 = vmatpush1.msra.mxu0 %v398
        %423 = vmatprep.subr.mxu0 0.0
        %424 = vmatpush1.msra.mxu0 %v399
        %425 = vmatprep.subr.mxu0 0.0
        %426 = vmatpush1.msra.mxu0 0.0
        %427 = vmatprep.subr.mxu0 0.0
        %428 = vmatpush1.msra.mxu0 0.0
        %429 = vmatprep.subr.mxu0 0.0
        %430 = vmatpush1.msra.mxu0 0.0
        %431 = vmatprep.subr.mxu0 0.0
        %432 = vmatpush1.msra.mxu0 0.0
        %433 = vmatprep.subr.mxu0 0.0
        %434 = vmatpush1.msra.mxu0 0.0
        %435 = vmatprep.subr.mxu0 0.0
        %436 = vmatpush1.msra.mxu0 0.0
        %437 = vmatprep.subr.mxu0 0.0
        %438 = vmatpush1.msra.mxu0 0.0
        %439 = vmatprep.subr.mxu0 0.0
        %440 = vmatpush1.msra.mxu0 0.0
        %441 = vmatprep.subr.mxu0 0.0
        %442 = vmatpush1.msra.mxu0 0.0
        %443 = vmatprep.subr.mxu0 0.0
        %444 = vmatpush1.msra.mxu0 0.0
        %445 = vmatprep.subr.mxu0 0.0
        %446 = vmatpush1.msra.mxu0 0.0
        %447 = vmatprep.subr.mxu0 0.0
        %448 = vmatpush1.msra.mxu0 0.0
        %449 = vmatprep.subr.mxu0 0.0
        %450 = vmatpush1.msra.mxu0 0.0
        %451 = vmatprep.subr.mxu0 0.0
        %452 = vmatpush1.msra.mxu0 0.0
        %453 = vmatprep.subr.mxu0 0.0
        %454 = vmatpush1.msra.mxu0 0.0
        %455 = vmatprep.subr.mxu0 0.0
        %456 = vmatpush1.msra.mxu0 0.0
        %457 = vmatprep.subr.mxu0 0.0
        %458 = vmatpush1.msra.mxu0 0.0
        %459 = vmatprep.subr.mxu0 0.0
        %460 = vmatpush1.msra.mxu0 0.0
        %461 = vmatprep.subr.mxu0 0.0
        %462 = vmatpush1.msra.mxu0 0.0
        %463 = vmatprep.subr.mxu0 0.0
        %464 = vmatpush1.msra.mxu0 0.0
        %465 = vmatprep.subr.mxu0 0.0
        %466 = vmatpush1.msra.mxu0 0.0
        %467 = vmatprep.subr.mxu0 0.0
        %468 = vmatpush1.msra.mxu0 0.0
        %469 = vmatprep.subr.mxu0 0.0
        %470 = vmatpush1.msra.mxu0 0.0
        %471 = vmatprep.subr.mxu0 0.0
        %472 = vmatpush1.msra.mxu0 0.0
        %473 = vmatprep.subr.mxu0 0.0
        %474 = vmatpush1.msra.mxu0 0.0
        %475 = vmatprep.subr.mxu0 0.0
        %476 = vmatpush1.msra.mxu0 0.0
        %477 = vmatprep.subr.mxu0 0.0
        %478 = vmatpush1.msra.mxu0 0.0
        %479 = vmatprep.subr.mxu0 0.0
        %480 = vmatpush1.msra.mxu0 0.0
        %481 = vmatprep.mubr.f32.mxu0 0.0
        %482 = vmatmul.mubr.f32.gmra.mrb[0].mxu0 %v406
        %v483 = vpop.f32.mrb[0].mxu0
        %v484 = vadd.f32 %v403, %v483
        %v485 = vpop.f32.mrb[0].mxu0
        %486 = vmatprep.mubr.f32.mxu0 0.0
        %487 = vmatmul.mubr.f32.gmra.mrb[0].mxu0 %v409
        %v488 = vpop.f32.mrb[0].mxu0
        %v489 = vadd.f32 %v403, %v488
        %v490 = vpop.f32.mrb[0].mxu0
        %491 = vmatprep.mubr.f32.mxu0 0.0
        %492 = vmatmul.mubr.f32.gmra.mrb[0].mxu0 %v412
        %v493 = vpop.f32.mrb[0].mxu0
        %v494 = vadd.f32 %v403, %v493
        %v495 = vpop.f32.mrb[0].mxu0
        %496 = vmatprep.mubr.f32.mxu0 0.0
        %497 = vmatmul.mubr.f32.gmra.mrb[0].mxu0 %v415
        %v498 = vpop.f32.mrb[0].mxu0
        %v499 = vadd.f32 %v403, %v498
        %v500 = vpop.f32.mrb[0].mxu0
        %501 = vdwg.mxu0
        %v502 = vmax.f32 %v484, 0.0
        %v503 = vmax.f32 %v489, 0.0
        %v504 = vmax.f32 %v494, 0.0
        %v505 = vmax.f32 %v499, 0.0
        %s506 = scalar_lea.vmem %s3, 32
        %v507 = vld [vmem:[%s506] sm:$0xff]
        %v508 = vld [vmem:[%s506 + $0x8] sm:$0xff]
        %v509 = vld [vmem:[%s506 + $0x10] sm:$0xff]
        %v510 = vld [vmem:[%s506 + $0x18] sm:$0xff]
        %v511 = vlaneseq
        %v512 = vshrl.u32 %v511, 7
        %v513 = vsub.s32 2, %v512
        %v514 = vrot.slane %v287, %v513
        %v516 = vsel %vm404, %v502, 0
        %v519 = vsel %vm404, %v503, 0
        %v522 = vsel %vm404, %v504, 0
        %v525 = vsel %vm404, %v505, 0
        %527 = vmatprep.subr.mxu0 0.0
        %528 = vmatpush1.msra.mxu0 %v507
        %529 = vmatprep.subr.mxu0 0.0
        %530 = vmatpush1.msra.mxu0 %v508
        %531 = vmatprep.subr.mxu0 0.0
        %532 = vmatpush1.msra.mxu0 %v509
        %533 = vmatprep.subr.mxu0 0.0
        %534 = vmatpush1.msra.mxu0 %v510
        %535 = vmatprep.subr.mxu0 0.0
        %536 = vmatpush1.msra.mxu0 0.0
        %537 = vmatprep.subr.mxu0 0.0
        %538 = vmatpush1.msra.mxu0 0.0
        %539 = vmatprep.subr.mxu0 0.0
        %540 = vmatpush1.msra.mxu0 0.0
        %541 = vmatprep.subr.mxu0 0.0
        %542 = vmatpush1.msra.mxu0 0.0
        %543 = vmatprep.subr.mxu0 0.0
        %544 = vmatpush1.msra.mxu0 0.0
        %545 = vmatprep.subr.mxu0 0.0
        %546 = vmatpush1.msra.mxu0 0.0
        %547 = vmatprep.subr.mxu0 0.0
        %548 = vmatpush1.msra.mxu0 0.0
        %549 = vmatprep.subr.mxu0 0.0
        %550 = vmatpush1.msra.mxu0 0.0
        %551 = vmatprep.subr.mxu0 0.0
        %552 = vmatpush1.msra.mxu0 0.0
        %553 = vmatprep.subr.mxu0 0.0
        %554 = vmatpush1.msra.mxu0 0.0
        %555 = vmatprep.subr.mxu0 0.0
        %556 = vmatpush1.msra.mxu0 0.0
        %557 = vmatprep.subr.mxu0 0.0
        %558 = vmatpush1.msra.mxu0 0.0
        %559 = vmatprep.subr.mxu0 0.0
        %560 = vmatpush1.msra.mxu0 0.0
        %561 = vmatprep.subr.mxu0 0.0
        %562 = vmatpush1.msra.mxu0 0.0
        %563 = vmatprep.subr.mxu0 0.0
        %564 = vmatpush1.msra.mxu0 0.0
        %565 = vmatprep.subr.mxu0 0.0
        %566 = vmatpush1.msra.mxu0 0.0
        %567 = vmatprep.subr.mxu0 0.0
        %568 = vmatpush1.msra.mxu0 0.0
        %569 = vmatprep.subr.mxu0 0.0
        %570 = vmatpush1.msra.mxu0 0.0
        %571 = vmatprep.subr.mxu0 0.0
        %572 = vmatpush1.msra.mxu0 0.0
        %573 = vmatprep.subr.mxu0 0.0
        %574 = vmatpush1.msra.mxu0 0.0
        %575 = vmatprep.subr.mxu0 0.0
        %576 = vmatpush1.msra.mxu0 0.0
        %577 = vmatprep.subr.mxu0 0.0
        %578 = vmatpush1.msra.mxu0 0.0
        %579 = vmatprep.subr.mxu0 0.0
        %580 = vmatpush1.msra.mxu0 0.0
        %581 = vmatprep.subr.mxu0 0.0
        %582 = vmatpush1.msra.mxu0 0.0
        %583 = vmatprep.subr.mxu0 0.0
        %584 = vmatpush1.msra.mxu0 0.0
        %585 = vmatprep.subr.mxu0 0.0
        %586 = vmatpush1.msra.mxu0 0.0
        %587 = vmatprep.subr.mxu0 0.0
        %588 = vmatpush1.msra.mxu0 0.0
        %589 = vmatprep.subr.mxu0 0.0
        %590 = vmatpush1.msra.mxu0 0.0
        %591 = vmatprep.mubr.f32.mxu0 0.0
        %592 = vmatmul.mubr.f32.gmra.mrb[0].mxu0 %v516
        %v593 = vpop.f32.mrb[0].mxu0
        %v594 = vadd.f32 %v514, %v593
        %v595 = vpop.f32.mrb[0].mxu0
        %596 = vmatprep.mubr.f32.mxu0 0.0
        %597 = vmatmul.mubr.f32.gmra.mrb[0].mxu0 %v519
        %v598 = vpop.f32.mrb[0].mxu0
        %v599 = vadd.f32 %v514, %v598
        %v600 = vpop.f32.mrb[0].mxu0
        %601 = vmatprep.mubr.f32.mxu0 0.0
        %602 = vmatmul.mubr.f32.gmra.mrb[0].mxu0 %v522
        %v603 = vpop.f32.mrb[0].mxu0
        %v604 = vadd.f32 %v514, %v603
        %v605 = vpop.f32.mrb[0].mxu0
        %606 = vmatprep.mubr.f32.mxu0 0.0
        %607 = vmatmul.mubr.f32.gmra.mrb[0].mxu0 %v525
        %v608 = vpop.f32.mrb[0].mxu0
        %v609 = vadd.f32 %v514, %v608
        %v610 = vpop.f32.mrb[0].mxu0
        %611 = vdwg.mxu0
        %v612 = vmax.f32 %v594, 0.0
        %v613 = vmax.f32 %v599, 0.0
        %v614 = vmax.f32 %v604, 0.0
        %v615 = vmax.f32 %v609, 0.0
        %s616 = scalar_lea.vmem %s3, 64
        %v617 = vld [vmem:[%s616] sm:$0xff]
        %v618 = vld [vmem:[%s616 + $0x8] sm:$0xff]
        %v619 = vld [vmem:[%s616 + $0x10] sm:$0xff]
        %v620 = vld [vmem:[%s616 + $0x18] sm:$0xff]
        %v621 = vlaneseq
        %v622 = vshrl.u32 %v621, 7
        %v623 = vsub.s32 3, %v622
        %v624 = vrot.slane %v287, %v623
        %v626 = vsel %vm404, %v612, 0
        %v629 = vsel %vm404, %v613, 0
        %v632 = vsel %vm404, %v614, 0
        %v635 = vsel %vm404, %v615, 0
        %637 = vmatprep.subr.mxu0 0.0
        %638 = vmatpush1.msra.mxu0 %v617
        %639 = vmatprep.subr.mxu0 0.0
        %640 = vmatpush1.msra.mxu0 %v618
        %641 = vmatprep.subr.mxu0 0.0
        %642 = vmatpush1.msra.mxu0 %v619
        %643 = vmatprep.subr.mxu0 0.0
        %644 = vmatpush1.msra.mxu0 %v620
        %645 = vmatprep.subr.mxu0 0.0
        %646 = vmatpush1.msra.mxu0 0.0
        %647 = vmatprep.subr.mxu0 0.0
        %648 = vmatpush1.msra.mxu0 0.0
        %649 = vmatprep.subr.mxu0 0.0
        %650 = vmatpush1.msra.mxu0 0.0
        %651 = vmatprep.subr.mxu0 0.0
        %652 = vmatpush1.msra.mxu0 0.0
        %653 = vmatprep.subr.mxu0 0.0
        %654 = vmatpush1.msra.mxu0 0.0
        %655 = vmatprep.subr.mxu0 0.0
        %656 = vmatpush1.msra.mxu0 0.0
        %657 = vmatprep.subr.mxu0 0.0
        %658 = vmatpush1.msra.mxu0 0.0
        %659 = vmatprep.subr.mxu0 0.0
        %660 = vmatpush1.msra.mxu0 0.0
        %661 = vmatprep.subr.mxu0 0.0
        %662 = vmatpush1.msra.mxu0 0.0
        %663 = vmatprep.subr.mxu0 0.0
        %664 = vmatpush1.msra.mxu0 0.0
        %665 = vmatprep.subr.mxu0 0.0
        %666 = vmatpush1.msra.mxu0 0.0
        %667 = vmatprep.subr.mxu0 0.0
        %668 = vmatpush1.msra.mxu0 0.0
        %669 = vmatprep.subr.mxu0 0.0
        %670 = vmatpush1.msra.mxu0 0.0
        %671 = vmatprep.subr.mxu0 0.0
        %672 = vmatpush1.msra.mxu0 0.0
        %673 = vmatprep.subr.mxu0 0.0
        %674 = vmatpush1.msra.mxu0 0.0
        %675 = vmatprep.subr.mxu0 0.0
        %676 = vmatpush1.msra.mxu0 0.0
        %677 = vmatprep.subr.mxu0 0.0
        %678 = vmatpush1.msra.mxu0 0.0
        %679 = vmatprep.subr.mxu0 0.0
        %680 = vmatpush1.msra.mxu0 0.0
        %681 = vmatprep.subr.mxu0 0.0
        %682 = vmatpush1.msra.mxu0 0.0
        %683 = vmatprep.subr.mxu0 0.0
        %684 = vmatpush1.msra.mxu0 0.0
        %685 = vmatprep.subr.mxu0 0.0
        %686 = vmatpush1.msra.mxu0 0.0
        %687 = vmatprep.subr.mxu0 0.0
        %688 = vmatpush1.msra.mxu0 0.0
        %689 = vmatprep.subr.mxu0 0.0
        %690 = vmatpush1.msra.mxu0 0.0
        %691 = vmatprep.subr.mxu0 0.0
        %692 = vmatpush1.msra.mxu0 0.0
        %693 = vmatprep.subr.mxu0 0.0
        %694 = vmatpush1.msra.mxu0 0.0
        %695 = vmatprep.subr.mxu0 0.0
        %696 = vmatpush1.msra.mxu0 0.0
        %697 = vmatprep.subr.mxu0 0.0
        %698 = vmatpush1.msra.mxu0 0.0
        %699 = vmatprep.subr.mxu0 0.0
        %700 = vmatpush1.msra.mxu0 0.0
        %701 = vmatprep.mubr.f32.mxu0 0.0
        %702 = vmatmul.mubr.f32.gmra.mrb[0].mxu0 %v626
        %v703 = vpop.f32.mrb[0].mxu0
        %v704 = vadd.f32 %v624, %v703
        %v705 = vpop.f32.mrb[0].mxu0
        %706 = vmatprep.mubr.f32.mxu0 0.0
        %707 = vmatmul.mubr.f32.gmra.mrb[0].mxu0 %v629
        %v708 = vpop.f32.mrb[0].mxu0
        %v709 = vadd.f32 %v624, %v708
        %v710 = vpop.f32.mrb[0].mxu0
        %711 = vmatprep.mubr.f32.mxu0 0.0
        %712 = vmatmul.mubr.f32.gmra.mrb[0].mxu0 %v632
        %v713 = vpop.f32.mrb[0].mxu0
        %v714 = vadd.f32 %v624, %v713
        %v715 = vpop.f32.mrb[0].mxu0
        %716 = vmatprep.mubr.f32.mxu0 0.0
        %717 = vmatmul.mubr.f32.gmra.mrb[0].mxu0 %v635
        %v718 = vpop.f32.mrb[0].mxu0
        %v719 = vadd.f32 %v624, %v718
        %v720 = vpop.f32.mrb[0].mxu0
        %721 = vdwg.mxu0
        %v722 = vmax.f32 %v704, 0.0
        %v723 = vmax.f32 %v709, 0.0
        %v724 = vmax.f32 %v714, 0.0
        %v725 = vmax.f32 %v719, 0.0
        %s726 = scalar_lea.vmem %s3, 96
        %v727 = vld [vmem:[%s726] sm:$0xff]
        %v728 = vld [vmem:[%s726 + $0x8] sm:$0xff]
        %v729 = vld [vmem:[%s726 + $0x10] sm:$0xff]
        %v730 = vld [vmem:[%s726 + $0x18] sm:$0xff]
        %v731 = vlaneseq
        %v732 = vshrl.u32 %v731, 7
        %v733 = vsub.s32 4, %v732
        %v734 = vrot.slane %v287, %v733
        %v736 = vsel %vm404, %v722, 0
        %v739 = vsel %vm404, %v723, 0
        %v742 = vsel %vm404, %v724, 0
        %v745 = vsel %vm404, %v725, 0
        %747 = vmatprep.subr.mxu0 0.0
        %748 = vmatpush1.msra.mxu0 %v727
        %749 = vmatprep.subr.mxu0 0.0
        %750 = vmatpush1.msra.mxu0 %v728
        %751 = vmatprep.subr.mxu0 0.0
        %752 = vmatpush1.msra.mxu0 %v729
        %753 = vmatprep.subr.mxu0 0.0
        %754 = vmatpush1.msra.mxu0 %v730
        %755 = vmatprep.subr.mxu0 0.0
        %756 = vmatpush1.msra.mxu0 0.0
        %757 = vmatprep.subr.mxu0 0.0
        %758 = vmatpush1.msra.mxu0 0.0
        %759 = vmatprep.subr.mxu0 0.0
        %760 = vmatpush1.msra.mxu0 0.0
        %761 = vmatprep.subr.mxu0 0.0
        %762 = vmatpush1.msra.mxu0 0.0
        %763 = vmatprep.subr.mxu0 0.0
        %764 = vmatpush1.msra.mxu0 0.0
        %765 = vmatprep.subr.mxu0 0.0
        %766 = vmatpush1.msra.mxu0 0.0
        %767 = vmatprep.subr.mxu0 0.0
        %768 = vmatpush1.msra.mxu0 0.0
        %769 = vmatprep.subr.mxu0 0.0
        %770 = vmatpush1.msra.mxu0 0.0
        %771 = vmatprep.subr.mxu0 0.0
        %772 = vmatpush1.msra.mxu0 0.0
        %773 = vmatprep.subr.mxu0 0.0
        %774 = vmatpush1.msra.mxu0 0.0
        %775 = vmatprep.subr.mxu0 0.0
        %776 = vmatpush1.msra.mxu0 0.0
        %777 = vmatprep.subr.mxu0 0.0
        %778 = vmatpush1.msra.mxu0 0.0
        %779 = vmatprep.subr.mxu0 0.0
        %780 = vmatpush1.msra.mxu0 0.0
        %781 = vmatprep.subr.mxu0 0.0
        %782 = vmatpush1.msra.mxu0 0.0
        %783 = vmatprep.subr.mxu0 0.0
        %784 = vmatpush1.msra.mxu0 0.0
        %785 = vmatprep.subr.mxu0 0.0
        %786 = vmatpush1.msra.mxu0 0.0
        %787 = vmatprep.subr.mxu0 0.0
        %788 = vmatpush1.msra.mxu0 0.0
        %789 = vmatprep.subr.mxu0 0.0
        %790 = vmatpush1.msra.mxu0 0.0
        %791 = vmatprep.subr.mxu0 0.0
        %792 = vmatpush1.msra.mxu0 0.0
        %793 = vmatprep.subr.mxu0 0.0
        %794 = vmatpush1.msra.mxu0 0.0
        %795 = vmatprep.subr.mxu0 0.0
        %796 = vmatpush1.msra.mxu0 0.0
        %797 = vmatprep.subr.mxu0 0.0
        %798 = vmatpush1.msra.mxu0 0.0
        %799 = vmatprep.subr.mxu0 0.0
        %800 = vmatpush1.msra.mxu0 0.0
        %801 = vmatprep.subr.mxu0 0.0
        %802 = vmatpush1.msra.mxu0 0.0
        %803 = vmatprep.subr.mxu0 0.0
        %804 = vmatpush1.msra.mxu0 0.0
        %805 = vmatprep.subr.mxu0 0.0
        %806 = vmatpush1.msra.mxu0 0.0
        %807 = vmatprep.subr.mxu0 0.0
        %808 = vmatpush1.msra.mxu0 0.0
        %809 = vmatprep.subr.mxu0 0.0
        %810 = vmatpush1.msra.mxu0 0.0
        %811 = vmatprep.mubr.f32.mxu0 0.0
        %812 = vmatmul.mubr.f32.gmra.mrb[0].mxu0 %v736
        %v813 = vpop.f32.mrb[0].mxu0
        %v814 = vadd.f32 %v734, %v813
        %v815 = vpop.f32.mrb[0].mxu0
        %816 = vmatprep.mubr.f32.mxu0 0.0
        %817 = vmatmul.mubr.f32.gmra.mrb[0].mxu0 %v739
        %v818 = vpop.f32.mrb[0].mxu0
        %v819 = vadd.f32 %v734, %v818
        %v820 = vpop.f32.mrb[0].mxu0
        %821 = vmatprep.mubr.f32.mxu0 0.0
        %822 = vmatmul.mubr.f32.gmra.mrb[0].mxu0 %v742
        %v823 = vpop.f32.mrb[0].mxu0
        %v824 = vadd.f32 %v734, %v823
        %v825 = vpop.f32.mrb[0].mxu0
        %826 = vmatprep.mubr.f32.mxu0 0.0
        %827 = vmatmul.mubr.f32.gmra.mrb[0].mxu0 %v745
        %v828 = vpop.f32.mrb[0].mxu0
        %v829 = vadd.f32 %v734, %v828
        %v830 = vpop.f32.mrb[0].mxu0
        %831 = vdwg.mxu0
        %v832 = vmax.f32 %v814, 0.0
        %v833 = vmax.f32 %v819, 0.0
        %v834 = vmax.f32 %v824, 0.0
        %v835 = vmax.f32 %v829, 0.0
        %v836 = vld [vmem:[%s4] sm:$0xff]
        %v837 = vld [vmem:[%s4 + $0x8] sm:$0xff]
        %v838 = vld [vmem:[%s4 + $0x10] sm:$0xff]
        %v839 = vld [vmem:[%s4 + $0x18] sm:$0xff]
        %v840 = vld [vmem:[%s5] sm:$0x1]
        %v842 = vlaneseq
        %v843 = vshrl.u32 %v842, 7
        %v844 = vsub.s32 0, %v843
        %v845 = vrot.slane %v840, %v844
        %v848 = vsel %vm404, %v832, 0
        %v851 = vsel %vm404, %v833, 0
        %v854 = vsel %vm404, %v834, 0
        %v857 = vsel %vm404, %v835, 0
        %859 = vmatprep.subr.mxu0 0.0
        %860 = vmatpush1.msra.mxu0 %v836
        %861 = vmatprep.subr.mxu0 0.0
        %862 = vmatpush1.msra.mxu0 %v837
        %863 = vmatprep.subr.mxu0 0.0
        %864 = vmatpush1.msra.mxu0 %v838
        %865 = vmatprep.subr.mxu0 0.0
        %866 = vmatpush1.msra.mxu0 %v839
        %867 = vmatprep.subr.mxu0 0.0
        %868 = vmatpush1.msra.mxu0 0.0
        %869 = vmatprep.subr.mxu0 0.0
        %870 = vmatpush1.msra.mxu0 0.0
        %871 = vmatprep.subr.mxu0 0.0
        %872 = vmatpush1.msra.mxu0 0.0
        %873 = vmatprep.subr.mxu0 0.0
        %874 = vmatpush1.msra.mxu0 0.0
        %875 = vmatprep.subr.mxu0 0.0
        %876 = vmatpush1.msra.mxu0 0.0
        %877 = vmatprep.subr.mxu0 0.0
        %878 = vmatpush1.msra.mxu0 0.0
        %879 = vmatprep.subr.mxu0 0.0
        %880 = vmatpush1.msra.mxu0 0.0
        %881 = vmatprep.subr.mxu0 0.0
        %882 = vmatpush1.msra.mxu0 0.0
        %883 = vmatprep.subr.mxu0 0.0
        %884 = vmatpush1.msra.mxu0 0.0
        %885 = vmatprep.subr.mxu0 0.0
        %886 = vmatpush1.msra.mxu0 0.0
        %887 = vmatprep.subr.mxu0 0.0
        %888 = vmatpush1.msra.mxu0 0.0
        %889 = vmatprep.subr.mxu0 0.0
        %890 = vmatpush1.msra.mxu0 0.0
        %891 = vmatprep.subr.mxu0 0.0
        %892 = vmatpush1.msra.mxu0 0.0
        %893 = vmatprep.subr.mxu0 0.0
        %894 = vmatpush1.msra.mxu0 0.0
        %895 = vmatprep.subr.mxu0 0.0
        %896 = vmatpush1.msra.mxu0 0.0
        %897 = vmatprep.subr.mxu0 0.0
        %898 = vmatpush1.msra.mxu0 0.0
        %899 = vmatprep.subr.mxu0 0.0
        %900 = vmatpush1.msra.mxu0 0.0
        %901 = vmatprep.subr.mxu0 0.0
        %902 = vmatpush1.msra.mxu0 0.0
        %903 = vmatprep.subr.mxu0 0.0
        %904 = vmatpush1.msra.mxu0 0.0
        %905 = vmatprep.subr.mxu0 0.0
        %906 = vmatpush1.msra.mxu0 0.0
        %907 = vmatprep.subr.mxu0 0.0
        %908 = vmatpush1.msra.mxu0 0.0
        %909 = vmatprep.subr.mxu0 0.0
        %910 = vmatpush1.msra.mxu0 0.0
        %911 = vmatprep.subr.mxu0 0.0
        %912 = vmatpush1.msra.mxu0 0.0
        %913 = vmatprep.subr.mxu0 0.0
        %914 = vmatpush1.msra.mxu0 0.0
        %915 = vmatprep.subr.mxu0 0.0
        %916 = vmatpush1.msra.mxu0 0.0
        %917 = vmatprep.subr.mxu0 0.0
        %918 = vmatpush1.msra.mxu0 0.0
        %919 = vmatprep.subr.mxu0 0.0
        %920 = vmatpush1.msra.mxu0 0.0
        %921 = vmatprep.subr.mxu0 0.0
        %922 = vmatpush1.msra.mxu0 0.0
        %923 = vmatprep.mubr.f32.mxu0 0.0
        %924 = vmatmul.mubr.f32.gmra.mrb[0].mxu0 %v848
        %v925 = vpop.f32.mrb[0].mxu0
        %v926 = vadd.f32 %v845, %v925
        %v927 = vpop.f32.mrb[0].mxu0
        %928 = vmatprep.mubr.f32.mxu0 0.0
        %929 = vmatmul.mubr.f32.gmra.mrb[0].mxu0 %v851
        %v930 = vpop.f32.mrb[0].mxu0
        %v931 = vadd.f32 %v845, %v930
        %v932 = vpop.f32.mrb[0].mxu0
        %933 = vmatprep.mubr.f32.mxu0 0.0
        %934 = vmatmul.mubr.f32.gmra.mrb[0].mxu0 %v854
        %v935 = vpop.f32.mrb[0].mxu0
        %v936 = vadd.f32 %v845, %v935
        %v937 = vpop.f32.mrb[0].mxu0
        %938 = vmatprep.mubr.f32.mxu0 0.0
        %939 = vmatmul.mubr.f32.gmra.mrb[0].mxu0 %v857
        %v940 = vpop.f32.mrb[0].mxu0
        %v941 = vadd.f32 %v845, %v940
        %v942 = vpop.f32.mrb[0].mxu0
        %943 = vdwg.mxu0
        %vm944 = vcmask 64512
        %945 = vst.msk [vmem:[%s281] sm:$0xff] %vm944, %v926
        %946 = vst.msk [vmem:[%s281 + $0x8] sm:$0xff] %vm944, %v931
        %947 = vst.msk [vmem:[%s281 + $0x10] sm:$0xff] %vm944, %v936
        %948 = vst.msk [vmem:[%s281 + $0x18] sm:$0xff] %vm944, %v941
        %s949 = smul.u32 4, %s19
        %p950 = scmp.lt.s32.totalorder %s949, 7
        %s951 = scalar_select %p950, %s949, 7
        %s952 = smul.addr %s951, 8
        %s953 = scalar_lea.vmem %s6, %s952
        // Predicated region
        $region53: #{tpu_custom_call.1} parent=43 // pred_check
          %p954 = pneg %p168
        $region54: #{tpu_custom_call.1} parent=43 // pred_check_branch
          %956 = sbr.rel (%p954) target = $region56
        $region55: #{tpu_custom_call.1} parent=43 // pred_region
          %s957 = smul.u32 4, %s19
        $region56: #{tpu_custom_call.1} parent=43 // pred_fallthru
          _
      $region44: #{tpu_custom_call.1} parent=5 // pred_fallthru
        _
      %p958 = scmp.le.s32.totalorder 2, %s14
      // Predicated region
      $region57: #{tpu_custom_call.1} parent=5 // pred_check
        %p959 = pneg %p958
      $region58: #{tpu_custom_call.1} parent=5 // pred_check_branch
        %961 = sbr.rel (%p959) target = $region60
      $region59: #{tpu_custom_call.1} parent=5 // pred_region
        %s962 = ssub.s32 %s14, 2
        // Predicated region
        $region61: #{tpu_custom_call.1} parent=59 // pred_check
          %p963 = pneg %p174
        $region62: #{tpu_custom_call.1} parent=59 // pred_check_branch
          %965 = sbr.rel (%p963) target = $region64
        $region63: #{tpu_custom_call.1} parent=59 // pred_region
          %s966 = smul.u32 4, %s20
          %p967 = scmp.lt.s32.totalorder %s966, 7
          %s968 = scalar_select %p967, %s966, 7
          %s969 = smul.addr %s968, 8
          %s970 = scalar_lea.vmem %s6, %s969
        $region64: #{tpu_custom_call.1} parent=59 // pred_fallthru
          _
      $region60: #{tpu_custom_call.1} parent=5 // pred_fallthru
        _
    $region6: #{tpu_custom_call.1} parent=1 // loop_footer
      %s18 = sadd.s32 1, %s14
    $region7: #{tpu_custom_call.1} parent=1 // loop_footer_branch
      %13 = sbr.rel target = $region3
    $region8: #{tpu_custom_call.1} parent=1 // loop_exit
      _
    %971 = vsyncpa [#allocation3], 1
    %s972 = scalar_lea.sflag [#allocation3], 1
    %973 = vsyncpa %s972, 1
    %974 = vsyncpa [#allocation5], 1

</llo_original>
